<compile_context>
chip_gen: v7x
topology: tpu7x:2x2x1
jax: 0.10.0
libtpu: 0.0.40
codegen_flags: <defaults>
</compile_context>

<pallas_src>
import jax
import jax.numpy as jnp
from jax.experimental import pallas as pl
from jax.experimental.pallas import tpu as pltpu


def _round_up(n, m):
    return ((n + m - 1) // m) * m


def _vmem_capacity_bytes():
    """Per-TensorCore VMEM capacity; conservative 64 MiB (v7x) fallback."""
    try:
        return int(pltpu.get_tpu_info().vmem_capacity_bytes)
    except Exception:
        return 64 * 1024 * 1024


def _image_attention_kernel(x_ref, w12_ref, b12_ref, w3_ref, b3_ref, a_ref):
    """One row-tile of the fused NonLinear -> Linear -> softmax pipeline."""
    dp = w3_ref.shape[0]                     # padded feature dim (static)

    x = x_ref[...]                           # (tile_m, Dp) bf16

    # Fused lin1/lin2: one MXU pass over x, f32 accumulation, f32 bias add.
    yg = jnp.dot(x, w12_ref[...], preferred_element_type=jnp.float32) + b12_ref[...]
    # sigmoid(z) == 0.5*(1 + tanh(z/2)): one EUP transcendental instead of exp+recip.
    g = 0.5 * (1.0 + jnp.tanh(0.5 * yg[:, dp:]))
    h = jnp.tanh(yg[:, :dp]) * g

    # Final linear (bf16 operands, f32 accum) + numerically-stable softmax in f32.
    s = jnp.dot(h.astype(w3_ref.dtype), w3_ref[...],
                preferred_element_type=jnp.float32) + b3_ref[...]
    s = s - jnp.max(s, axis=-1, keepdims=True)
    e = jnp.exp(s)
    inv = pl.reciprocal(jnp.sum(e, axis=-1, keepdims=True), approx=True)
    a_ref[...] = (e * inv).astype(a_ref.dtype)


def image_attention(v, q, params, *, tile_m=None,
                    compute_dtype=jnp.bfloat16, out_dtype=jnp.bfloat16):
    """Pallas implementation of ImageAttention.forward.

    Returns (x, a):
      x : concat(v, q)            -- what the PyTorch module returns.
      a : softmax(lin(f(x)))      -- computed inside the Pallas kernel, shape (N, D).
    """
    Nv, D = v.shape
    Nq, Dq = q.shape
    assert D == Dq, "v and q must share the feature dimension"
    N = Nv + Nq
    w1, b1, w2, b2, w3, b3 = params

    w_itemsize = jnp.dtype(compute_dtype).itemsize
    out_itemsize = jnp.dtype(out_dtype).itemsize
    Dp = _round_up(D, 128)                   # lane-dense feature dim

    vmem_cap = _vmem_capacity_bytes()
    vmem_budget = int(0.75 * vmem_cap)

    # ---- generation-aware row-tile selection -------------------------------
    if tile_m is None:
        # Bigger default tiles on 128 MiB parts (v5e/v6e); smaller on v7x (64 MiB).
        tile = 512 if (vmem_cap >= 96 * 1024 * 1024 and Dp <= 1024) else 256
        # v7x megacore: ensure >= 2 grid steps when there is enough work.
        if vmem_cap < 96 * 1024 * 1024 and N >= 512:
            tile = min(tile, _round_up(pl.cdiv(N, 2), 8))
    else:
        tile = int(tile_m)
    tile = max(8, min(_round_up(tile, 8), _round_up(N, 8)))

    # Single-buffered weights + double-buffered row in/out + in-kernel intermediates
    # (yg f32 -> 8*Dp B/row, h bf16 -> 2*Dp, s/e f32 -> 8*Dp  =>  ~18 B per element).
    weight_bytes = (3 * Dp * Dp) * w_itemsize + (3 * Dp) * 4

    def _tile_bytes(t):
        return t * Dp * (2 * (w_itemsize + out_itemsize) + 18)

    while tile > 8 and weight_bytes + _tile_bytes(tile) > vmem_budget:
        tile = _round_up(max(8, tile // 2), 8)
    tile_m_eff = tile
    Np = _round_up(N, tile_m_eff)

    estimate = weight_bytes + _tile_bytes(tile_m_eff)
    vmem_limit = int(min(vmem_budget, max(32 * 1024 * 1024, 2 * estimate)))

    # ---- operand packing (glue stays in plain JAX) -------------------------
    # Kernel input built directly in compute dtype: no intermediate f32 concat in HBM.
    x_pad = jnp.zeros((Np, Dp), compute_dtype)
    x_pad = x_pad.at[:Nv, :D].set(v.astype(compute_dtype))
    x_pad = x_pad.at[Nv:N, :D].set(q.astype(compute_dtype))

    # Fused W1/W2 operand: x @ [W1.T | W2.T] -> (tile, 2*Dp), split in-kernel.
    w12 = jnp.zeros((Dp, 2 * Dp), compute_dtype)
    w12 = w12.at[:D, :D].set(w1.T.astype(compute_dtype))
    w12 = w12.at[:D, Dp:Dp + D].set(w2.T.astype(compute_dtype))
    b12 = jnp.zeros((1, 2 * Dp), jnp.float32)
    b12 = b12.at[0, :D].set(b1).at[0, Dp:Dp + D].set(b2)

    w3p = jnp.zeros((Dp, Dp), compute_dtype).at[:D, :D].set(w3.T.astype(compute_dtype))
    # Padded logit columns get a huge negative bias so softmax assigns them ~0.
    b3p = jnp.full((1, Dp), -1e30, jnp.float32).at[0, :D].set(b3)

    # ---- pallas_call --------------------------------------------------------
    grid = (Np // tile_m_eff,)
    row_spec = pl.BlockSpec((tile_m_eff, Dp), lambda i: (i, 0))
    out_spec = pl.BlockSpec((tile_m_eff, Dp), lambda i: (i, 0))

    def _const_spec(shape, single_buffer):
        # Constant-index blocks: single-buffering halves their VMEM footprint.
        if single_buffer:
            return pl.BlockSpec(shape, lambda i: (0, 0), pipeline_mode=pl.Buffered(1))
        return pl.BlockSpec(shape, lambda i: (0, 0))

    def _call(single_buffer_weights):
        in_specs = [
            row_spec,
            _const_spec((Dp, 2 * Dp), single_buffer_weights),
            _const_spec((1, 2 * Dp), single_buffer_weights),
            _const_spec((Dp, Dp), single_buffer_weights),
            _const_spec((1, Dp), single_buffer_weights),
        ]
        fn = pl.pallas_call(
            _image_attention_kernel,
            out_shape=jax.ShapeDtypeStruct((Np, Dp), out_dtype),
            grid_spec=pltpu.PrefetchScalarGridSpec(
                num_scalar_prefetch=0,
                grid=grid,
                in_specs=in_specs,
                out_specs=out_spec,
            ),
            compiler_params=pltpu.CompilerParams(
                dimension_semantics=("parallel",),
                vmem_limit_bytes=vmem_limit,
            ),
        )
        return jax.block_until_ready(fn(x_pad, w12, b12, w3p, b3p))

    try:
        a_pad = _call(single_buffer_weights=True)
    except Exception:
        # Fallback: default (double) buffering if Buffered(1) is not supported.
        a_pad = _call(single_buffer_weights=False)

    a = a_pad[:N, :D]
    # The PyTorch module returns x = concat(v, q) and discards `a`; we return both
    # so the kernel output is observable.
    x = jnp.concatenate([v, q], axis=0)
    return x, a


def _init_params(key, d):
    """Deterministic synthetic Linear parameters (PyTorch layout: W is (out, in))."""
    ks = jax.random.split(key, 6)
    scale = 1.0 / jnp.sqrt(d)
    w1 = jax.random.uniform(ks[0], (d, d), jnp.float32, -scale, scale)
    b1 = jax.random.uniform(ks[1], (d,), jnp.float32, -scale, scale)
    w2 = jax.random.uniform(ks[2], (d, d), jnp.float32, -scale, scale)
    b2 = jax.random.uniform(ks[3], (d,), jnp.float32, -scale, scale)
    w3 = jax.random.uniform(ks[4], (d, d), jnp.float32, -scale, scale)
    b3 = jax.random.uniform(ks[5], (d,), jnp.float32, -scale, scale)
    return (w1, b1, w2, b2, w3, b3)


def _reference(v, q, params):
    """Pure-JAX f32 reference of the same math, for correctness checking."""
    w1, b1, w2, b2, w3, b3 = params
    x = jnp.concatenate([v, q], axis=0)
    h = jnp.tanh(x @ w1.T + b1) * jax.nn.sigmoid(x @ w2.T + b2)
    a = jax.nn.softmax(h @ w3.T + b3, axis=-1)
    return x, a


if __name__ == "__main__":
    D = 32      # input_size (hidden)
    NV = 8      # rows of v
    NQ = 8      # rows of q

    key = jax.random.PRNGKey(0)
    kv, kq, kp = jax.random.split(key, 3)
    v = jax.random.normal(kv, (NV, D), jnp.float32)
    q = jax.random.normal(kq, (NQ, D), jnp.float32)
    params = _init_params(kp, D)

    x_out, a_out = image_attention(v, q, params)
    x_out = jax.block_until_ready(x_out)
    a_out = jax.block_until_ready(a_out)

    x_ref, a_ref = _reference(v, q, params)
    assert x_out.shape == (NV + NQ, D)
    assert a_out.shape == (NV + NQ, D)
    assert jnp.allclose(x_out, x_ref, atol=1e-5, rtol=1e-5)

    a32 = a_out.astype(jnp.float32)
    assert bool(jnp.all(jnp.isfinite(a32)))
    # bf16 operands / bf16 output -> loosened tolerances (f32 accum + f32 softmax math).
    assert jnp.allclose(a32, a_ref, atol=2e-2, rtol=2e-2)
    assert jnp.allclose(jnp.sum(a32, axis=-1), 1.0, atol=2e-2)

    print("KERNEL_OK")
</pallas_src>

<mosaic_0001>
module attributes {stable_mosaic.version = 11 : i64} {
  func.func @_image_attention_kernel(%arg0: i32, %arg1: memref<16x128xbf16, #tpu.memory_space<vmem>>, %arg2: memref<128x256xbf16, #tpu.memory_space<vmem>>, %arg3: memref<1x256xf32, #tpu.memory_space<vmem>>, %arg4: memref<128x128xbf16, #tpu.memory_space<vmem>>, %arg5: memref<1x128xf32, #tpu.memory_space<vmem>>, %arg6: memref<16x128xbf16, #tpu.memory_space<vmem>>) attributes {dimension_semantics = [#tpu.dimension_semantics<parallel>], iteration_bounds = array<i64: 1>, scalar_prefetch = 0 : i64, scratch_operands = 0 : i64, tpu.core_type = #tpu.core_type<tc>, window_params = [{transform_indices = @transform_0, window_bounds = array<i64: 16, 128>}, {pipeline_mode = #tpu.pipeline_mode<synchronous>, transform_indices = @transform_1, window_bounds = array<i64: 128, 256>}, {pipeline_mode = #tpu.pipeline_mode<synchronous>, transform_indices = @transform_2, window_bounds = array<i64: 1, 256>}, {pipeline_mode = #tpu.pipeline_mode<synchronous>, transform_indices = @transform_3, window_bounds = array<i64: 128, 128>}, {pipeline_mode = #tpu.pipeline_mode<synchronous>, transform_indices = @transform_4, window_bounds = array<i64: 1, 128>}, {transform_indices = @transform_5, window_bounds = array<i64: 16, 128>}]} {
    %c0 = arith.constant 0 : index
    %c0_0 = arith.constant 0 : index
    %0 = vector.load %arg1[%c0, %c0_0] : memref<16x128xbf16, #tpu.memory_space<vmem>>, vector<16x128xbf16>
    %c0_1 = arith.constant 0 : index
    %c0_2 = arith.constant 0 : index
    %1 = vector.load %arg2[%c0_1, %c0_2] : memref<128x256xbf16, #tpu.memory_space<vmem>>, vector<128x256xbf16>
    %cst = arith.constant dense<0.000000e+00> : vector<16x256xf32>
    %2 = tpu.matmul %0, %1, %cst {dimension_numbers = #tpu.dot_dimension_numbers<[1], [0], [0], [1], [0, 0, 1, 1], [], []>} : vector<16x128xbf16>, vector<128x256xbf16>, vector<16x256xf32> -> vector<16x256xf32>
    %c0_3 = arith.constant 0 : index
    %c0_4 = arith.constant 0 : index
    %3 = vector.load %arg3[%c0_3, %c0_4] : memref<1x256xf32, #tpu.memory_space<vmem>>, vector<1x256xf32>
    %4 = vector.broadcast %3 : vector<1x256xf32> to vector<16x256xf32>
    %5 = arith.addf %2, %4 : vector<16x256xf32>
    %6 = vector.extract_strided_slice %5 {offsets = [0, 128], sizes = [16, 128], strides = [1, 1]} : vector<16x256xf32> to vector<16x128xf32>
    %cst_5 = arith.constant 5.000000e-01 : f32
    %7 = vector.broadcast %cst_5 : f32 to vector<16x128xf32>
    %8 = arith.mulf %7, %6 : vector<16x128xf32>
    %9 = math.tanh %8 : vector<16x128xf32>
    %cst_6 = arith.constant 1.000000e+00 : f32
    %10 = vector.broadcast %cst_6 : f32 to vector<16x128xf32>
    %11 = arith.addf %10, %9 : vector<16x128xf32>
    %cst_7 = arith.constant 5.000000e-01 : f32
    %12 = vector.broadcast %cst_7 : f32 to vector<16x128xf32>
    %13 = arith.mulf %12, %11 : vector<16x128xf32>
    %14 = vector.extract_strided_slice %5 {offsets = [0, 0], sizes = [16, 128], strides = [1, 1]} : vector<16x256xf32> to vector<16x128xf32>
    %15 = math.tanh %14 : vector<16x128xf32>
    %16 = arith.mulf %15, %13 : vector<16x128xf32>
    %17 = arith.truncf %16 : vector<16x128xf32> to vector<16x128xbf16>
    %c0_8 = arith.constant 0 : index
    %c0_9 = arith.constant 0 : index
    %18 = vector.load %arg4[%c0_8, %c0_9] : memref<128x128xbf16, #tpu.memory_space<vmem>>, vector<128x128xbf16>
    %cst_10 = arith.constant dense<0.000000e+00> : vector<16x128xf32>
    %19 = tpu.matmul %17, %18, %cst_10 {dimension_numbers = #tpu.dot_dimension_numbers<[1], [0], [0], [1], [0, 0, 1, 1], [], []>} : vector<16x128xbf16>, vector<128x128xbf16>, vector<16x128xf32> -> vector<16x128xf32>
    %c0_11 = arith.constant 0 : index
    %c0_12 = arith.constant 0 : index
    %20 = vector.load %arg5[%c0_11, %c0_12] : memref<1x128xf32, #tpu.memory_space<vmem>>, vector<1x128xf32>
    %21 = vector.broadcast %20 : vector<1x128xf32> to vector<16x128xf32>
    %22 = arith.addf %19, %21 : vector<16x128xf32>
    %cst_13 = arith.constant dense<0xFF800000> : vector<16xf32>
    %23 = vector.multi_reduction <maximumf>, %22, %cst_13 [1] : vector<16x128xf32> to vector<16xf32>
    %24 = vector.shape_cast %23 : vector<16xf32> to vector<16x1xf32>
    %25 = vector.broadcast %24 : vector<16x1xf32> to vector<16x128xf32>
    %26 = arith.subf %22, %25 : vector<16x128xf32>
    %27 = math.exp %26 : vector<16x128xf32>
    %cst_14 = arith.constant dense<0.000000e+00> : vector<16xf32>
    %28 = vector.multi_reduction <add>, %27, %cst_14 [1] : vector<16x128xf32> to vector<16xf32>
    %29 = vector.shape_cast %28 : vector<16xf32> to vector<16x1xf32>
    %30 = tpu.reciprocal %29 {approx = true} : vector<16x1xf32> -> vector<16x1xf32>
    %31 = vector.broadcast %30 : vector<16x1xf32> to vector<16x128xf32>
    %32 = arith.mulf %27, %31 : vector<16x128xf32>
    %33 = arith.truncf %32 : vector<16x128xf32> to vector<16x128xbf16>
    %c0_15 = arith.constant 0 : index
    %c0_16 = arith.constant 0 : index
    %34 = vector.load %arg6[%c0_15, %c0_16] : memref<16x128xbf16, #tpu.memory_space<vmem>>, vector<16x128xbf16>
    tpu.vector_store %arg6[%c0_15, %c0_16], %33 {strides = array<i32>} : memref<16x128xbf16, #tpu.memory_space<vmem>>, vector<16x128xbf16>,
    return
  }
  func.func @transform_0(%arg0: i32) -> (i32, i32) {
    %c0_i32 = arith.constant 0 : i32
    %c0_i32_0 = arith.constant 0 : i32
    return %arg0, %c0_i32 : i32, i32
  }
  func.func @transform_1(%arg0: i32) -> (i32, i32) {
    %c0_i32 = arith.constant 0 : i32
    %c0_i32_0 = arith.constant 0 : i32
    %c0_i32_1 = arith.constant 0 : i32
    return %c0_i32, %c0_i32_0 : i32, i32
  }
  func.func @transform_2(%arg0: i32) -> (i32, i32) {
    %c0_i32 = arith.constant 0 : i32
    %c0_i32_0 = arith.constant 0 : i32
    %c0_i32_1 = arith.constant 0 : i32
    return %c0_i32, %c0_i32_0 : i32, i32
  }
  func.func @transform_3(%arg0: i32) -> (i32, i32) {
    %c0_i32 = arith.constant 0 : i32
    %c0_i32_0 = arith.constant 0 : i32
    %c0_i32_1 = arith.constant 0 : i32
    return %c0_i32, %c0_i32_0 : i32, i32
  }
  func.func @transform_4(%arg0: i32) -> (i32, i32) {
    %c0_i32 = arith.constant 0 : i32
    %c0_i32_0 = arith.constant 0 : i32
    %c0_i32_1 = arith.constant 0 : i32
    return %c0_i32, %c0_i32_0 : i32, i32
  }
  func.func @transform_5(%arg0: i32) -> (i32, i32) {
    %c0_i32 = arith.constant 0 : i32
    %c0_i32_0 = arith.constant 0 : i32
    return %arg0, %c0_i32 : i32, i32
  }
}

module attributes {stable_mosaic.version = 11 : i64} {
  func.func @_image_attention_kernel(%arg0: i32, %arg1: memref<16x128xbf16, #tpu.memory_space<vmem>>, %arg2: memref<128x256xbf16, #tpu.memory_space<vmem>>, %arg3: memref<1x256xf32, #tpu.memory_space<vmem>>, %arg4: memref<128x128xbf16, #tpu.memory_space<vmem>>, %arg5: memref<1x128xf32, #tpu.memory_space<vmem>>, %arg6: memref<16x128xbf16, #tpu.memory_space<vmem>>) attributes {dimension_semantics = [#tpu.dimension_semantics<parallel>], iteration_bounds = array<i64: 1>, scalar_prefetch = 0 : i64, scratch_operands = 0 : i64, tpu.core_type = #tpu.core_type<tc>, window_params = [{transform_indices = @transform_0, window_bounds = array<i64: 16, 128>}, {pipeline_mode = #tpu.pipeline_mode<synchronous>, transform_indices = @transform_1, window_bounds = array<i64: 128, 256>}, {pipeline_mode = #tpu.pipeline_mode<synchronous>, transform_indices = @transform_2, window_bounds = array<i64: 1, 256>}, {pipeline_mode = #tpu.pipeline_mode<synchronous>, transform_indices = @transform_3, window_bounds = array<i64: 128, 128>}, {pipeline_mode = #tpu.pipeline_mode<synchronous>, transform_indices = @transform_4, window_bounds = array<i64: 1, 128>}, {transform_indices = @transform_5, window_bounds = array<i64: 16, 128>}]} {
    %c0 = arith.constant 0 : index
    %c0_0 = arith.constant 0 : index
    %0 = vector.load %arg1[%c0, %c0_0] : memref<16x128xbf16, #tpu.memory_space<vmem>>, vector<16x128xbf16>
    %c0_1 = arith.constant 0 : index
    %c0_2 = arith.constant 0 : index
    %1 = vector.load %arg2[%c0_1, %c0_2] : memref<128x256xbf16, #tpu.memory_space<vmem>>, vector<128x256xbf16>
    %cst = arith.constant dense<0.000000e+00> : vector<16x256xf32>
    %2 = tpu.matmul %0, %1, %cst {dimension_numbers = #tpu.dot_dimension_numbers<[1], [0], [0], [1], [0, 0, 1, 1], [], []>} : vector<16x128xbf16>, vector<128x256xbf16>, vector<16x256xf32> -> vector<16x256xf32>
    %c0_3 = arith.constant 0 : index
    %c0_4 = arith.constant 0 : index
    %3 = vector.load %arg3[%c0_3, %c0_4] : memref<1x256xf32, #tpu.memory_space<vmem>>, vector<1x256xf32>
    %4 = vector.broadcast %3 : vector<1x256xf32> to vector<16x256xf32>
    %5 = arith.addf %2, %4 : vector<16x256xf32>
    %6 = vector.extract_strided_slice %5 {offsets = [0, 128], sizes = [16, 128], strides = [1, 1]} : vector<16x256xf32> to vector<16x128xf32>
    %cst_5 = arith.constant 5.000000e-01 : f32
    %7 = vector.broadcast %cst_5 : f32 to vector<16x128xf32>
    %8 = arith.mulf %7, %6 : vector<16x128xf32>
    %9 = math.tanh %8 : vector<16x128xf32>
    %cst_6 = arith.constant 1.000000e+00 : f32
    %10 = vector.broadcast %cst_6 : f32 to vector<16x128xf32>
    %11 = arith.addf %10, %9 : vector<16x128xf32>
    %cst_7 = arith.constant 5.000000e-01 : f32
    %12 = vector.broadcast %cst_7 : f32 to vector<16x128xf32>
    %13 = arith.mulf %12, %11 : vector<16x128xf32>
    %14 = vector.extract_strided_slice %5 {offsets = [0, 0], sizes = [16, 128], strides = [1, 1]} : vector<16x256xf32> to vector<16x128xf32>
    %15 = math.tanh %14 : vector<16x128xf32>
    %16 = arith.mulf %15, %13 : vector<16x128xf32>
    %17 = arith.truncf %16 : vector<16x128xf32> to vector<16x128xbf16>
    %c0_8 = arith.constant 0 : index
    %c0_9 = arith.constant 0 : index
    %18 = vector.load %arg4[%c0_8, %c0_9] : memref<128x128xbf16, #tpu.memory_space<vmem>>, vector<128x128xbf16>
    %cst_10 = arith.constant dense<0.000000e+00> : vector<16x128xf32>
    %19 = tpu.matmul %17, %18, %cst_10 {dimension_numbers = #tpu.dot_dimension_numbers<[1], [0], [0], [1], [0, 0, 1, 1], [], []>} : vector<16x128xbf16>, vector<128x128xbf16>, vector<16x128xf32> -> vector<16x128xf32>
    %c0_11 = arith.constant 0 : index
    %c0_12 = arith.constant 0 : index
    %20 = vector.load %arg5[%c0_11, %c0_12] : memref<1x128xf32, #tpu.memory_space<vmem>>, vector<1x128xf32>
    %21 = vector.broadcast %20 : vector<1x128xf32> to vector<16x128xf32>
    %22 = arith.addf %19, %21 : vector<16x128xf32>
    %cst_13 = arith.constant dense<0xFF800000> : vector<16xf32>
    %23 = vector.multi_reduction <maximumf>, %22, %cst_13 [1] : vector<16x128xf32> to vector<16xf32>
    %24 = vector.shape_cast %23 : vector<16xf32> to vector<16x1xf32>
    %25 = vector.broadcast %24 : vector<16x1xf32> to vector<16x128xf32>
    %26 = arith.subf %22, %25 : vector<16x128xf32>
    %27 = math.exp %26 : vector<16x128xf32>
    %cst_14 = arith.constant dense<0.000000e+00> : vector<16xf32>
    %28 = vector.multi_reduction <add>, %27, %cst_14 [1] : vector<16x128xf32> to vector<16xf32>
    %29 = vector.shape_cast %28 : vector<16xf32> to vector<16x1xf32>
    %30 = tpu.reciprocal %29 {approx = true} : vector<16x1xf32> -> vector<16x1xf32>
    %31 = vector.broadcast %30 : vector<16x1xf32> to vector<16x128xf32>
    %32 = arith.mulf %27, %31 : vector<16x128xf32>
    %33 = arith.truncf %32 : vector<16x128xf32> to vector<16x128xbf16>
    %c0_15 = arith.constant 0 : index
    %c0_16 = arith.constant 0 : index
    %34 = vector.load %arg6[%c0_15, %c0_16] : memref<16x128xbf16, #tpu.memory_space<vmem>>, vector<16x128xbf16>
    tpu.vector_store %arg6[%c0_15, %c0_16], %33 {strides = array<i32>} : memref<16x128xbf16, #tpu.memory_space<vmem>>, vector<16x128xbf16>,
    return
  }
  func.func @transform_0(%arg0: i32) -> (i32, i32) {
    %c0_i32 = arith.constant 0 : i32
    %c0_i32_0 = arith.constant 0 : i32
    return %arg0, %c0_i32 : i32, i32
  }
  func.func @transform_1(%arg0: i32) -> (i32, i32) {
    %c0_i32 = arith.constant 0 : i32
    %c0_i32_0 = arith.constant 0 : i32
    %c0_i32_1 = arith.constant 0 : i32
    return %c0_i32, %c0_i32_0 : i32, i32
  }
  func.func @transform_2(%arg0: i32) -> (i32, i32) {
    %c0_i32 = arith.constant 0 : i32
    %c0_i32_0 = arith.constant 0 : i32
    %c0_i32_1 = arith.constant 0 : i32
    return %c0_i32, %c0_i32_0 : i32, i32
  }
  func.func @transform_3(%arg0: i32) -> (i32, i32) {
    %c0_i32 = arith.constant 0 : i32
    %c0_i32_0 = arith.constant 0 : i32
    %c0_i32_1 = arith.constant 0 : i32
    return %c0_i32, %c0_i32_0 : i32, i32
  }
  func.func @transform_4(%arg0: i32) -> (i32, i32) {
    %c0_i32 = arith.constant 0 : i32
    %c0_i32_0 = arith.constant 0 : i32
    %c0_i32_1 = arith.constant 0 : i32
    return %c0_i32, %c0_i32_0 : i32, i32
  }
  func.func @transform_5(%arg0: i32) -> (i32, i32) {
    %c0_i32 = arith.constant 0 : i32
    %c0_i32_0 = arith.constant 0 : i32
    return %arg0, %c0_i32 : i32, i32
  }
}

</mosaic_0001>

<llo_original>
// kernel: tpu_custom_call.1
$region0: #{tpu_custom_call.1}
  #allocation0 [shape = 'u32[]', space=smem, size = 0x4, offset = 0x4, fixed_abs, tag = 'smem constant byte address 0x4 - core index']
  #allocation1 [shape = 'u32[144,128]{1,0:T(1,128)}', space=vmem, size = 0x12000, scoped, tag = 'internal scratch']
  %s0 = inlined_call_operand.hbm [shape: bf16[16,128], index: 0, kind: input, shape index: {}]
  %s1 = inlined_call_operand.hbm [shape: bf16[128,256], index: 1, kind: input, shape index: {}]
  %s2 = inlined_call_operand.vmem [shape: f32[1,256], index: 2, kind: input, shape index: {}]
  %s3 = inlined_call_operand.hbm [shape: bf16[128,128], index: 3, kind: input, shape index: {}]
  %s4 = inlined_call_operand.vmem [shape: f32[1,128], index: 4, kind: input, shape index: {}]
  %s5 = inlined_call_operand.hbm [shape: bf16[16,128], index: 5, kind: output, shape index: {}]
  %s6 = sld [smem:[#allocation0]]
  $region42: #{tpu_custom_call.1} parent=0
    _
  %s8 = ssub.s32 1, %s6
  %s9 = scalar_select 0, %s8, %s6
  $region1: #{tpu_custom_call.1} parent=0
    #allocation2 [shape = 'u8[4096]{0}', space=vmem, size = 0x1000, scoped, tag = 'input window, operand 0, single buffered']
    #allocation3 [shape = 's32[1]{0}', space=sflag, size = 0x4, scoped, tag = 'scoped memory for tpu_custom_call.1']
    #allocation4 [shape = 's32[1]{0}', space=sflag, size = 0x4, scoped, tag = 'scoped memory for tpu_custom_call.1']
    #allocation5 [shape = 'u8[65536]{0}', space=vmem, size = 0x10000, scoped, tag = 'input window, operand 1, single buffered']
    #allocation6 [shape = 's32[1]{0}', space=sflag, size = 0x4, scoped, tag = 'scoped memory for tpu_custom_call.1']
    #allocation7 [shape = 'u8[32768]{0}', space=vmem, size = 0x8000, scoped, tag = 'input window, operand 3, single buffered']
    #allocation8 [shape = 'u8[4096]{0}', space=vmem, size = 0x1000, scoped, tag = 'output window, operand 0, single buffered']
    %10 = vsyncpa [#allocation3], 0
    %11 = vsyncpa [#allocation6], 0
    %12 = vsyncpa [#allocation4], 0
    // Predicated region
    $region2: #{tpu_custom_call.1} parent=1 // pred_check
      _
    $region3: #{tpu_custom_call.1} parent=1 // pred_check_branch
      %14 = sbr.rel (0) target = $region5
    $region4: #{tpu_custom_call.1} parent=1 // pred_region
      %s16 = ssub.s32 128, 128
      %17 = vsyncadd [#allocation3], %s16
      %s18 = sshll.u32 [#allocation2], 4
      %s19 = int_to_ptr.vmem [resolvable:$true] %s18
      %24 = dma.hbm_to_vmem [thread:$0]  %s0, 128, %s19, [#allocation3], 64, 64, 4
    $region5: #{tpu_custom_call.1} parent=1 // pred_fallthru
      _
    // Predicated region
    $region6: #{tpu_custom_call.1} parent=1 // pred_check
      _
    $region7: #{tpu_custom_call.1} parent=1 // pred_check_branch
      %26 = sbr.rel (0) target = $region9
    $region8: #{tpu_custom_call.1} parent=1 // pred_region
      %s28 = ssub.s32 2048, 2048
      %29 = vsyncadd [#allocation6], %s28
      %s30 = sshll.u32 [#allocation5], 4
      %s31 = int_to_ptr.vmem [resolvable:$true] %s30
      %36 = dma.hbm_to_vmem [thread:$0]  %s1, 2048, %s31, [#allocation6], 128, 128, 8
    $region9: #{tpu_custom_call.1} parent=1 // pred_fallthru
      _
    // Predicated region
    $region10: #{tpu_custom_call.1} parent=1 // pred_check
      _
    $region11: #{tpu_custom_call.1} parent=1 // pred_check_branch
      %38 = sbr.rel (0) target = $region13
    $region12: #{tpu_custom_call.1} parent=1 // pred_region
      _
    $region13: #{tpu_custom_call.1} parent=1 // pred_fallthru
      _
    // Predicated region
    $region14: #{tpu_custom_call.1} parent=1 // pred_check
      _
    $region15: #{tpu_custom_call.1} parent=1 // pred_check_branch
      %40 = sbr.rel (0) target = $region17
    $region16: #{tpu_custom_call.1} parent=1 // pred_region
      %s42 = ssub.s32 1024, 1024
      %43 = vsyncadd [#allocation6], %s42
      %s44 = sshll.u32 [#allocation7], 4
      %s45 = int_to_ptr.vmem [resolvable:$true] %s44
      %50 = dma.hbm_to_vmem [thread:$0]  %s3, 1024, %s45, [#allocation6], 64, 64, 4
    $region17: #{tpu_custom_call.1} parent=1 // pred_fallthru
      _
    // Predicated region
    $region18: #{tpu_custom_call.1} parent=1 // pred_check
      _
    $region19: #{tpu_custom_call.1} parent=1 // pred_check_branch
      %52 = sbr.rel (0) target = $region21
    $region20: #{tpu_custom_call.1} parent=1 // pred_region
      _
    $region21: #{tpu_custom_call.1} parent=1 // pred_fallthru
      _
    // Predicated region
    $region22: #{tpu_custom_call.1} parent=1 // pred_check
      _
    $region23: #{tpu_custom_call.1} parent=1 // pred_check_branch
      %54 = sbr.rel (0) target = $region25
    $region24: #{tpu_custom_call.1} parent=1 // pred_region
      %55 = dma.done [#allocation3], 128
    $region25: #{tpu_custom_call.1} parent=1 // pred_fallthru
      _
    // Predicated region
    $region26: #{tpu_custom_call.1} parent=1 // pred_check
      _
    $region27: #{tpu_custom_call.1} parent=1 // pred_check_branch
      %57 = sbr.rel (0) target = $region29
    $region28: #{tpu_custom_call.1} parent=1 // pred_region
      %58 = dma.done [#allocation6], 2048
    $region29: #{tpu_custom_call.1} parent=1 // pred_fallthru
      _
    // Predicated region
    $region30: #{tpu_custom_call.1} parent=1 // pred_check
      _
    $region31: #{tpu_custom_call.1} parent=1 // pred_check_branch
      %60 = sbr.rel (0) target = $region33
    $region32: #{tpu_custom_call.1} parent=1 // pred_region
      %61 = dma.done [#allocation6], 1024
    $region33: #{tpu_custom_call.1} parent=1 // pred_fallthru
      _
    %v63 = vld [vmem:[#allocation2] sm:$0xf]
    %v64 = vld [vmem:[#allocation2 + $0x4] sm:$0xf]
    %v65 = vld [vmem:[#allocation5] sm:$0xff]
    %v66 = vld [vmem:[#allocation5 + $0x8] sm:$0xff]
    %v67 = vld [vmem:[#allocation5 + $0x10] sm:$0xff]
    %v68 = vld [vmem:[#allocation5 + $0x18] sm:$0xff]
    %v69 = vld [vmem:[#allocation5 + $0x20] sm:$0xff]
    %v70 = vld [vmem:[#allocation5 + $0x28] sm:$0xff]
    %v71 = vld [vmem:[#allocation5 + $0x30] sm:$0xff]
    %v72 = vld [vmem:[#allocation5 + $0x38] sm:$0xff]
    %v73 = vld [vmem:[#allocation5 + $0x40] sm:$0xff]
    %v74 = vld [vmem:[#allocation5 + $0x48] sm:$0xff]
    %v75 = vld [vmem:[#allocation5 + $0x50] sm:$0xff]
    %v76 = vld [vmem:[#allocation5 + $0x58] sm:$0xff]
    %v77 = vld [vmem:[#allocation5 + $0x60] sm:$0xff]
    %v78 = vld [vmem:[#allocation5 + $0x68] sm:$0xff]
    %v79 = vld [vmem:[#allocation5 + $0x70] sm:$0xff]
    %v80 = vld [vmem:[#allocation5 + $0x78] sm:$0xff]
    %v81 = vld [vmem:[%s2] sm:$0x3]
    %v83 = vlaneseq
    %v84 = vshrl.u32 %v83, 7
    %v85 = vsub.s32 0, %v84
    %v86 = vrot.slane %v81, %v85
    %v87 = vlaneseq
    %v88 = vshrl.u32 %v87, 7
    %v89 = vsub.s32 1, %v88
    %v90 = vrot.slane %v81, %v89
    %v95 = vunpack.c.l.b16 %v63
    %v96 = vunpack.c.l.b16 %v64
    %v97 = vpack.c.b16 %v96, %v95
    %v115 = vunpack.c.l.b16 %v65
    %v116 = vunpack.c.h.b16 %v65
    %v117 = vunpack.c.l.b16 %v66
    %v118 = vunpack.c.h.b16 %v66
    %v119 = vunpack.c.l.b16 %v67
    %v120 = vunpack.c.h.b16 %v67
    %v121 = vunpack.c.l.b16 %v68
    %v122 = vunpack.c.h.b16 %v68
    %v123 = vunpack.c.l.b16 %v69
    %v124 = vunpack.c.h.b16 %v69
    %v125 = vunpack.c.l.b16 %v70
    %v126 = vunpack.c.h.b16 %v70
    %v127 = vunpack.c.l.b16 %v71
    %v128 = vunpack.c.h.b16 %v71
    %v129 = vunpack.c.l.b16 %v72
    %v130 = vunpack.c.h.b16 %v72
    %v131 = vunpack.c.l.b16 %v73
    %v132 = vunpack.c.h.b16 %v73
    %v133 = vunpack.c.l.b16 %v74
    %v134 = vunpack.c.h.b16 %v74
    %v135 = vunpack.c.l.b16 %v75
    %v136 = vunpack.c.h.b16 %v75
    %v137 = vunpack.c.l.b16 %v76
    %v138 = vunpack.c.h.b16 %v76
    %v139 = vunpack.c.l.b16 %v77
    %v140 = vunpack.c.h.b16 %v77
    %v141 = vunpack.c.l.b16 %v78
    %v142 = vunpack.c.h.b16 %v78
    %v143 = vunpack.c.l.b16 %v79
    %v144 = vunpack.c.h.b16 %v79
    %v145 = vunpack.c.l.b16 %v80
    %v146 = vunpack.c.h.b16 %v80
    %v147 = vpack.c.b16 %v117, %v115
    %v148 = vpack.c.b16 %v118, %v116
    %v149 = vpack.c.b16 %v121, %v119
    %v150 = vpack.c.b16 %v122, %v120
    %v151 = vpack.c.b16 %v125, %v123
    %v152 = vpack.c.b16 %v126, %v124
    %v153 = vpack.c.b16 %v129, %v127
    %v154 = vpack.c.b16 %v130, %v128
    %v155 = vpack.c.b16 %v133, %v131
    %v156 = vpack.c.b16 %v134, %v132
    %v157 = vpack.c.b16 %v137, %v135
    %v158 = vpack.c.b16 %v138, %v136
    %v159 = vpack.c.b16 %v141, %v139
    %v160 = vpack.c.b16 %v142, %v140
    %v161 = vpack.c.b16 %v145, %v143
    %v162 = vpack.c.b16 %v146, %v144
    %179 = vmatprep.subr.bf16.mxu0 %v148
    %180 = vmatpush1.bf16.msra.mxu0 %v147
    %181 = vmatprep.subr.bf16.mxu0 %v150
    %182 = vmatpush1.bf16.msra.mxu0 %v149
    %183 = vmatprep.subr.bf16.mxu0 %v152
    %184 = vmatpush1.bf16.msra.mxu0 %v151
    %185 = vmatprep.subr.bf16.mxu0 %v154
    %186 = vmatpush1.bf16.msra.mxu0 %v153
    %187 = vmatprep.subr.bf16.mxu0 %v156
    %188 = vmatpush1.bf16.msra.mxu0 %v155
    %189 = vmatprep.subr.bf16.mxu0 %v158
    %190 = vmatpush1.bf16.msra.mxu0 %v157
    %191 = vmatprep.subr.bf16.mxu0 %v160
    %192 = vmatpush1.bf16.msra.mxu0 %v159
    %193 = vmatprep.subr.bf16.mxu0 %v162
    %194 = vmatpush1.bf16.msra.mxu0 %v161
    %195 = vmatprep.subr.bf16.mxu0 0
    %196 = vmatpush1.bf16.msra.mxu0 0
    %197 = vmatprep.subr.bf16.mxu0 0
    %198 = vmatpush1.bf16.msra.mxu0 0
    %199 = vmatprep.subr.bf16.mxu0 0
    %200 = vmatpush1.bf16.msra.mxu0 0
    %201 = vmatprep.subr.bf16.mxu0 0
    %202 = vmatpush1.bf16.msra.mxu0 0
    %203 = vmatprep.subr.bf16.mxu0 0
    %204 = vmatpush1.bf16.msra.mxu0 0
    %205 = vmatprep.subr.bf16.mxu0 0
    %206 = vmatpush1.bf16.msra.mxu0 0
    %207 = vmatprep.subr.bf16.mxu0 0
    %208 = vmatpush1.bf16.msra.mxu0 0
    %209 = vmatprep.subr.bf16.mxu0 0
    %210 = vmatpush1.bf16.msra.mxu0 0
    %211 = vmatprep.mubr.bf16.mxu0 0
    %212 = vmatmul.mubr.bf16.gmra.mrb[0].mxu0 %v97
    %v213 = vpop.f32.mrb[0].mxu0
    %v214 = vadd.f32 %v86, %v213
    %v215 = vpop.f32.mrb[0].mxu0
    %v216 = vadd.f32 %v90, %v215
    %v217 = vpop.f32.mrb[0].mxu0
    %v218 = vadd.f32 %v86, %v217
    %v219 = vpop.f32.mrb[0].mxu0
    %v220 = vadd.f32 %v90, %v219
    %221 = vdwg.mxu0
    %v222 = vmul.f32 %v216, 0.5
    %v223 = vmul.f32 %v220, 0.5
    %v224 = vtanh.pop %v222
    %v225 = vtanh.pop %v223
    %v226 = vadd.f32 %v224, 1.0
    %v227 = vadd.f32 %v225, 1.0
    %v228 = vmul.f32 %v226, 0.5
    %v229 = vmul.f32 %v227, 0.5
    %v230 = vtanh.pop %v214
    %v231 = vtanh.pop %v218
    %v232 = vmul.f32 %v230, %v228
    %v233 = vmul.f32 %v231, %v229
    %v234 = vpack.c.bf16 %v233, %v232
    %v235 = vld [vmem:[#allocation7] sm:$0xf]
    %v236 = vld [vmem:[#allocation7 + $0x4] sm:$0xf]
    %v237 = vld [vmem:[#allocation7 + $0x8] sm:$0xf]
    %v238 = vld [vmem:[#allocation7 + $0xc] sm:$0xf]
    %v239 = vld [vmem:[#allocation7 + $0x10] sm:$0xf]
    %v240 = vld [vmem:[#allocation7 + $0x14] sm:$0xf]
    %v241 = vld [vmem:[#allocation7 + $0x18] sm:$0xf]
    %v242 = vld [vmem:[#allocation7 + $0x1c] sm:$0xf]
    %v243 = vld [vmem:[#allocation7 + $0x20] sm:$0xf]
    %v244 = vld [vmem:[#allocation7 + $0x24] sm:$0xf]
    %v245 = vld [vmem:[#allocation7 + $0x28] sm:$0xf]
    %v246 = vld [vmem:[#allocation7 + $0x2c] sm:$0xf]
    %v247 = vld [vmem:[#allocation7 + $0x30] sm:$0xf]
    %v248 = vld [vmem:[#allocation7 + $0x34] sm:$0xf]
    %v249 = vld [vmem:[#allocation7 + $0x38] sm:$0xf]
    %v250 = vld [vmem:[#allocation7 + $0x3c] sm:$0xf]
    %v251 = vld [vmem:[%s4] sm:$0x1]
    %v253 = vlaneseq
    %v254 = vshrl.u32 %v253, 7
    %v255 = vsub.s32 0, %v254
    %v256 = vrot.slane %v251, %v255
    %v274 = vunpack.c.l.b16 %v235
    %v275 = vunpack.c.l.b16 %v236
    %v276 = vunpack.c.l.b16 %v237
    %v277 = vunpack.c.l.b16 %v238
    %v278 = vunpack.c.l.b16 %v239
    %v279 = vunpack.c.l.b16 %v240
    %v280 = vunpack.c.l.b16 %v241
    %v281 = vunpack.c.l.b16 %v242
    %v282 = vunpack.c.l.b16 %v243
    %v283 = vunpack.c.l.b16 %v244
    %v284 = vunpack.c.l.b16 %v245
    %v285 = vunpack.c.l.b16 %v246
    %v286 = vunpack.c.l.b16 %v247
    %v287 = vunpack.c.l.b16 %v248
    %v288 = vunpack.c.l.b16 %v249
    %v289 = vunpack.c.l.b16 %v250
    %v290 = vpack.c.b16 %v275, %v274
    %v291 = vpack.c.b16 %v277, %v276
    %v292 = vpack.c.b16 %v279, %v278
    %v293 = vpack.c.b16 %v281, %v280
    %v294 = vpack.c.b16 %v283, %v282
    %v295 = vpack.c.b16 %v285, %v284
    %v296 = vpack.c.b16 %v287, %v286
    %v297 = vpack.c.b16 %v289, %v288
    %306 = vmatprep.subr.bf16.mxu0 0
    %307 = vmatpush1.bf16.msra.mxu0 %v290
    %308 = vmatprep.subr.bf16.mxu0 0
    %309 = vmatpush1.bf16.msra.mxu0 %v291
    %310 = vmatprep.subr.bf16.mxu0 0
    %311 = vmatpush1.bf16.msra.mxu0 %v292
    %312 = vmatprep.subr.bf16.mxu0 0
    %313 = vmatpush1.bf16.msra.mxu0 %v293
    %314 = vmatprep.subr.bf16.mxu0 0
    %315 = vmatpush1.bf16.msra.mxu0 %v294
    %316 = vmatprep.subr.bf16.mxu0 0
    %317 = vmatpush1.bf16.msra.mxu0 %v295
    %318 = vmatprep.subr.bf16.mxu0 0
    %319 = vmatpush1.bf16.msra.mxu0 %v296
    %320 = vmatprep.subr.bf16.mxu0 0
    %321 = vmatpush1.bf16.msra.mxu0 %v297
    %322 = vmatprep.subr.bf16.mxu0 0
    %323 = vmatpush1.bf16.msra.mxu0 0
    %324 = vmatprep.subr.bf16.mxu0 0
    %325 = vmatpush1.bf16.msra.mxu0 0
    %326 = vmatprep.subr.bf16.mxu0 0
    %327 = vmatpush1.bf16.msra.mxu0 0
    %328 = vmatprep.subr.bf16.mxu0 0
    %329 = vmatpush1.bf16.msra.mxu0 0
    %330 = vmatprep.subr.bf16.mxu0 0
    %331 = vmatpush1.bf16.msra.mxu0 0
    %332 = vmatprep.subr.bf16.mxu0 0
    %333 = vmatpush1.bf16.msra.mxu0 0
    %334 = vmatprep.subr.bf16.mxu0 0
    %335 = vmatpush1.bf16.msra.mxu0 0
    %336 = vmatprep.subr.bf16.mxu0 0
    %337 = vmatpush1.bf16.msra.mxu0 0
    %338 = vmatprep.mubr.bf16.mxu0 0
    %339 = vmatmul.mubr.bf16.gmra.mrb[0].mxu0 %v234
    %v340 = vpop.f32.mrb[0].mxu0
    %v341 = vadd.f32 %v256, %v340
    %v342 = vpop.f32.mrb[0].mxu0
    %v343 = vpop.f32.mrb[0].mxu0
    %v344 = vadd.f32 %v256, %v343
    %v345 = vpop.f32.mrb[0].mxu0
    %346 = vdwg.mxu0
    %347 = vmax.xlane.f32.xlu0 %v341
    %v348 = vpop.xlane.xlu0 %347
    %349 = vmax.xlane.f32.xlu0 %v344
    %v350 = vpop.xlane.xlu0 %349
    %v351 = vsub.f32 %v341, %v348
    %v352 = vsub.f32 %v344, %v350
    %v353 = vmul.f32 %v351, 1.442695
    %v354 = vpow.pop %v353
    %v355 = vmul.f32 %v352, 1.442695
    %v356 = vpow.pop %v355
    %357 = vadd.xlane.f32.xlu0 %v354
    %v358 = vpop.xlane.xlu0 %357
    %359 = vadd.xlane.f32.xlu0 %v356
    %v360 = vpop.xlane.xlu0 %359
    %v361 = vrcp.pop %v358
    %v362 = vrcp.pop %v360
    %v363 = vmul.f32 %v354, %v361
    %v364 = vmul.f32 %v356, %v362
    %v365 = vpack.c.bf16 %v364, %v363
    %v367 = vunpack.c.l.b16 %v365
    %v368 = vunpack.c.h.b16 %v365
    %v369 = vpack.c.b16 %v367, %v367
    %v370 = vpack.c.b16 %v368, %v368
    %373 = vst [vmem:[#allocation8] sm:$0xf] %v369
    %374 = vst [vmem:[#allocation8 + $0x4] sm:$0xf] %v370
    // Predicated region
    $region34: #{tpu_custom_call.1} parent=1 // pred_check
      _
    $region35: #{tpu_custom_call.1} parent=1 // pred_check_branch
      %376 = sbr.rel (0) target = $region37
    $region36: #{tpu_custom_call.1} parent=1 // pred_region
      %s378 = ssub.s32 128, 128
      %379 = vsyncadd [#allocation4], %s378
      %s380 = sshll.u32 [#allocation8], 4
      %s381 = int_to_ptr.vmem [resolvable:$true] %s380
      %386 = dma.vmem_to_hbm [thread:$0]  %s381, 128, %s5, [#allocation4], 64, 64, 4
    $region37: #{tpu_custom_call.1} parent=1 // pred_fallthru
      _
    // Predicated region
    $region38: #{tpu_custom_call.1} parent=1 // pred_check
      _
    $region39: #{tpu_custom_call.1} parent=1 // pred_check_branch
      %388 = sbr.rel (0) target = $region41
    $region40: #{tpu_custom_call.1} parent=1 // pred_region
      %389 = dma.done [#allocation4], 128
    $region41: #{tpu_custom_call.1} parent=1 // pred_fallthru
      _
    %390 = vsyncpa [#allocation3], 1
    %391 = vsyncpa [#allocation6], 1
    %392 = vsyncpa [#allocation4], 1

// kernel: tpu_custom_call.1
$region0: #{tpu_custom_call.1}
  #allocation0 [shape = 'u32[]', space=smem, size = 0x4, offset = 0x4, fixed_abs, tag = 'smem constant byte address 0x4 - core index']
  #allocation1 [shape = 'u32[144,128]{1,0:T(1,128)}', space=vmem, size = 0x12000, scoped, tag = 'internal scratch']
  %s0 = inlined_call_operand.hbm [shape: bf16[16,128], index: 0, kind: input, shape index: {}]
  %s1 = inlined_call_operand.hbm [shape: bf16[128,256], index: 1, kind: input, shape index: {}]
  %s2 = inlined_call_operand.vmem [shape: f32[1,256], index: 2, kind: input, shape index: {}]
  %s3 = inlined_call_operand.hbm [shape: bf16[128,128], index: 3, kind: input, shape index: {}]
  %s4 = inlined_call_operand.vmem [shape: f32[1,128], index: 4, kind: input, shape index: {}]
  %s5 = inlined_call_operand.hbm [shape: bf16[16,128], index: 5, kind: output, shape index: {}]
  %s6 = sld [smem:[#allocation0]]
  $region42: #{tpu_custom_call.1} parent=0
    _
  %s8 = ssub.s32 1, %s6
  %s9 = scalar_select 0, %s8, %s6
  $region1: #{tpu_custom_call.1} parent=0
    #allocation2 [shape = 'u8[4096]{0}', space=vmem, size = 0x1000, scoped, tag = 'input window, operand 0, single buffered']
    #allocation3 [shape = 's32[1]{0}', space=sflag, size = 0x4, scoped, tag = 'scoped memory for tpu_custom_call.1']
    #allocation4 [shape = 's32[1]{0}', space=sflag, size = 0x4, scoped, tag = 'scoped memory for tpu_custom_call.1']
    #allocation5 [shape = 'u8[65536]{0}', space=vmem, size = 0x10000, scoped, tag = 'input window, operand 1, single buffered']
    #allocation6 [shape = 's32[1]{0}', space=sflag, size = 0x4, scoped, tag = 'scoped memory for tpu_custom_call.1']
    #allocation7 [shape = 'u8[32768]{0}', space=vmem, size = 0x8000, scoped, tag = 'input window, operand 3, single buffered']
    #allocation8 [shape = 'u8[4096]{0}', space=vmem, size = 0x1000, scoped, tag = 'output window, operand 0, single buffered']
    %10 = vsyncpa [#allocation3], 0
    %11 = vsyncpa [#allocation6], 0
    %12 = vsyncpa [#allocation4], 0
    // Predicated region
    $region2: #{tpu_custom_call.1} parent=1 // pred_check
      _
    $region3: #{tpu_custom_call.1} parent=1 // pred_check_branch
      %14 = sbr.rel (0) target = $region5
    $region4: #{tpu_custom_call.1} parent=1 // pred_region
      %s16 = ssub.s32 128, 128
      %17 = vsyncadd [#allocation3], %s16
      %s18 = sshll.u32 [#allocation2], 4
      %s19 = int_to_ptr.vmem [resolvable:$true] %s18
      %24 = dma.hbm_to_vmem [thread:$0]  %s0, 128, %s19, [#allocation3], 64, 64, 4
    $region5: #{tpu_custom_call.1} parent=1 // pred_fallthru
      _
    // Predicated region
    $region6: #{tpu_custom_call.1} parent=1 // pred_check
      _
    $region7: #{tpu_custom_call.1} parent=1 // pred_check_branch
      %26 = sbr.rel (0) target = $region9
    $region8: #{tpu_custom_call.1} parent=1 // pred_region
      %s28 = ssub.s32 2048, 2048
      %29 = vsyncadd [#allocation6], %s28
      %s30 = sshll.u32 [#allocation5], 4
      %s31 = int_to_ptr.vmem [resolvable:$true] %s30
      %36 = dma.hbm_to_vmem [thread:$0]  %s1, 2048, %s31, [#allocation6], 128, 128, 8
    $region9: #{tpu_custom_call.1} parent=1 // pred_fallthru
      _
    // Predicated region
    $region10: #{tpu_custom_call.1} parent=1 // pred_check
      _
    $region11: #{tpu_custom_call.1} parent=1 // pred_check_branch
      %38 = sbr.rel (0) target = $region13
    $region12: #{tpu_custom_call.1} parent=1 // pred_region
      _
    $region13: #{tpu_custom_call.1} parent=1 // pred_fallthru
      _
    // Predicated region
    $region14: #{tpu_custom_call.1} parent=1 // pred_check
      _
    $region15: #{tpu_custom_call.1} parent=1 // pred_check_branch
      %40 = sbr.rel (0) target = $region17
    $region16: #{tpu_custom_call.1} parent=1 // pred_region
      %s42 = ssub.s32 1024, 1024
      %43 = vsyncadd [#allocation6], %s42
      %s44 = sshll.u32 [#allocation7], 4
      %s45 = int_to_ptr.vmem [resolvable:$true] %s44
      %50 = dma.hbm_to_vmem [thread:$0]  %s3, 1024, %s45, [#allocation6], 64, 64, 4
    $region17: #{tpu_custom_call.1} parent=1 // pred_fallthru
      _
    // Predicated region
    $region18: #{tpu_custom_call.1} parent=1 // pred_check
      _
    $region19: #{tpu_custom_call.1} parent=1 // pred_check_branch
      %52 = sbr.rel (0) target = $region21
    $region20: #{tpu_custom_call.1} parent=1 // pred_region
      _
    $region21: #{tpu_custom_call.1} parent=1 // pred_fallthru
      _
    // Predicated region
    $region22: #{tpu_custom_call.1} parent=1 // pred_check
      _
    $region23: #{tpu_custom_call.1} parent=1 // pred_check_branch
      %54 = sbr.rel (0) target = $region25
    $region24: #{tpu_custom_call.1} parent=1 // pred_region
      %55 = dma.done [#allocation3], 128
    $region25: #{tpu_custom_call.1} parent=1 // pred_fallthru
      _
    // Predicated region
    $region26: #{tpu_custom_call.1} parent=1 // pred_check
      _
    $region27: #{tpu_custom_call.1} parent=1 // pred_check_branch
      %57 = sbr.rel (0) target = $region29
    $region28: #{tpu_custom_call.1} parent=1 // pred_region
      %58 = dma.done [#allocation6], 2048
    $region29: #{tpu_custom_call.1} parent=1 // pred_fallthru
      _
    // Predicated region
    $region30: #{tpu_custom_call.1} parent=1 // pred_check
      _
    $region31: #{tpu_custom_call.1} parent=1 // pred_check_branch
      %60 = sbr.rel (0) target = $region33
    $region32: #{tpu_custom_call.1} parent=1 // pred_region
      %61 = dma.done [#allocation6], 1024
    $region33: #{tpu_custom_call.1} parent=1 // pred_fallthru
      _
    %v63 = vld [vmem:[#allocation2] sm:$0xf]
    %v64 = vld [vmem:[#allocation2 + $0x4] sm:$0xf]
    %v65 = vld [vmem:[#allocation5] sm:$0xff]
    %v66 = vld [vmem:[#allocation5 + $0x8] sm:$0xff]
    %v67 = vld [vmem:[#allocation5 + $0x10] sm:$0xff]
    %v68 = vld [vmem:[#allocation5 + $0x18] sm:$0xff]
    %v69 = vld [vmem:[#allocation5 + $0x20] sm:$0xff]
    %v70 = vld [vmem:[#allocation5 + $0x28] sm:$0xff]
    %v71 = vld [vmem:[#allocation5 + $0x30] sm:$0xff]
    %v72 = vld [vmem:[#allocation5 + $0x38] sm:$0xff]
    %v73 = vld [vmem:[#allocation5 + $0x40] sm:$0xff]
    %v74 = vld [vmem:[#allocation5 + $0x48] sm:$0xff]
    %v75 = vld [vmem:[#allocation5 + $0x50] sm:$0xff]
    %v76 = vld [vmem:[#allocation5 + $0x58] sm:$0xff]
    %v77 = vld [vmem:[#allocation5 + $0x60] sm:$0xff]
    %v78 = vld [vmem:[#allocation5 + $0x68] sm:$0xff]
    %v79 = vld [vmem:[#allocation5 + $0x70] sm:$0xff]
    %v80 = vld [vmem:[#allocation5 + $0x78] sm:$0xff]
    %v81 = vld [vmem:[%s2] sm:$0x3]
    %v83 = vlaneseq
    %v84 = vshrl.u32 %v83, 7
    %v85 = vsub.s32 0, %v84
    %v86 = vrot.slane %v81, %v85
    %v87 = vlaneseq
    %v88 = vshrl.u32 %v87, 7
    %v89 = vsub.s32 1, %v88
    %v90 = vrot.slane %v81, %v89
    %v95 = vunpack.c.l.b16 %v63
    %v96 = vunpack.c.l.b16 %v64
    %v97 = vpack.c.b16 %v96, %v95
    %v115 = vunpack.c.l.b16 %v65
    %v116 = vunpack.c.h.b16 %v65
    %v117 = vunpack.c.l.b16 %v66
    %v118 = vunpack.c.h.b16 %v66
    %v119 = vunpack.c.l.b16 %v67
    %v120 = vunpack.c.h.b16 %v67
    %v121 = vunpack.c.l.b16 %v68
    %v122 = vunpack.c.h.b16 %v68
    %v123 = vunpack.c.l.b16 %v69
    %v124 = vunpack.c.h.b16 %v69
    %v125 = vunpack.c.l.b16 %v70
    %v126 = vunpack.c.h.b16 %v70
    %v127 = vunpack.c.l.b16 %v71
    %v128 = vunpack.c.h.b16 %v71
    %v129 = vunpack.c.l.b16 %v72
    %v130 = vunpack.c.h.b16 %v72
    %v131 = vunpack.c.l.b16 %v73
    %v132 = vunpack.c.h.b16 %v73
    %v133 = vunpack.c.l.b16 %v74
    %v134 = vunpack.c.h.b16 %v74
    %v135 = vunpack.c.l.b16 %v75
    %v136 = vunpack.c.h.b16 %v75
    %v137 = vunpack.c.l.b16 %v76
    %v138 = vunpack.c.h.b16 %v76
    %v139 = vunpack.c.l.b16 %v77
    %v140 = vunpack.c.h.b16 %v77
    %v141 = vunpack.c.l.b16 %v78
    %v142 = vunpack.c.h.b16 %v78
    %v143 = vunpack.c.l.b16 %v79
    %v144 = vunpack.c.h.b16 %v79
    %v145 = vunpack.c.l.b16 %v80
    %v146 = vunpack.c.h.b16 %v80
    %v147 = vpack.c.b16 %v117, %v115
    %v148 = vpack.c.b16 %v118, %v116
    %v149 = vpack.c.b16 %v121, %v119
    %v150 = vpack.c.b16 %v122, %v120
    %v151 = vpack.c.b16 %v125, %v123
    %v152 = vpack.c.b16 %v126, %v124
    %v153 = vpack.c.b16 %v129, %v127
    %v154 = vpack.c.b16 %v130, %v128
    %v155 = vpack.c.b16 %v133, %v131
    %v156 = vpack.c.b16 %v134, %v132
    %v157 = vpack.c.b16 %v137, %v135
    %v158 = vpack.c.b16 %v138, %v136
    %v159 = vpack.c.b16 %v141, %v139
    %v160 = vpack.c.b16 %v142, %v140
    %v161 = vpack.c.b16 %v145, %v143
    %v162 = vpack.c.b16 %v146, %v144
    %179 = vmatprep.subr.bf16.mxu0 %v148
    %180 = vmatpush1.bf16.msra.mxu0 %v147
    %181 = vmatprep.subr.bf16.mxu0 %v150
    %182 = vmatpush1.bf16.msra.mxu0 %v149
    %183 = vmatprep.subr.bf16.mxu0 %v152
    %184 = vmatpush1.bf16.msra.mxu0 %v151
    %185 = vmatprep.subr.bf16.mxu0 %v154
    %186 = vmatpush1.bf16.msra.mxu0 %v153
    %187 = vmatprep.subr.bf16.mxu0 %v156
    %188 = vmatpush1.bf16.msra.mxu0 %v155
    %189 = vmatprep.subr.bf16.mxu0 %v158
    %190 = vmatpush1.bf16.msra.mxu0 %v157
    %191 = vmatprep.subr.bf16.mxu0 %v160
    %192 = vmatpush1.bf16.msra.mxu0 %v159
    %193 = vmatprep.subr.bf16.mxu0 %v162
    %194 = vmatpush1.bf16.msra.mxu0 %v161
    %195 = vmatprep.subr.bf16.mxu0 0
    %196 = vmatpush1.bf16.msra.mxu0 0
    %197 = vmatprep.subr.bf16.mxu0 0
    %198 = vmatpush1.bf16.msra.mxu0 0
    %199 = vmatprep.subr.bf16.mxu0 0
    %200 = vmatpush1.bf16.msra.mxu0 0
    %201 = vmatprep.subr.bf16.mxu0 0
    %202 = vmatpush1.bf16.msra.mxu0 0
    %203 = vmatprep.subr.bf16.mxu0 0
    %204 = vmatpush1.bf16.msra.mxu0 0
    %205 = vmatprep.subr.bf16.mxu0 0
    %206 = vmatpush1.bf16.msra.mxu0 0
    %207 = vmatprep.subr.bf16.mxu0 0
    %208 = vmatpush1.bf16.msra.mxu0 0
    %209 = vmatprep.subr.bf16.mxu0 0
    %210 = vmatpush1.bf16.msra.mxu0 0
    %211 = vmatprep.mubr.bf16.mxu0 0
    %212 = vmatmul.mubr.bf16.gmra.mrb[0].mxu0 %v97
    %v213 = vpop.f32.mrb[0].mxu0
    %v214 = vadd.f32 %v86, %v213
    %v215 = vpop.f32.mrb[0].mxu0
    %v216 = vadd.f32 %v90, %v215
    %v217 = vpop.f32.mrb[0].mxu0
    %v218 = vadd.f32 %v86, %v217
    %v219 = vpop.f32.mrb[0].mxu0
    %v220 = vadd.f32 %v90, %v219
    %221 = vdwg.mxu0
    %v222 = vmul.f32 %v216, 0.5
    %v223 = vmul.f32 %v220, 0.5
    %v224 = vtanh.pop %v222
    %v225 = vtanh.pop %v223
    %v226 = vadd.f32 %v224, 1.0
    %v227 = vadd.f32 %v225, 1.0
    %v228 = vmul.f32 %v226, 0.5
    %v229 = vmul.f32 %v227, 0.5
    %v230 = vtanh.pop %v214
    %v231 = vtanh.pop %v218
    %v232 = vmul.f32 %v230, %v228
    %v233 = vmul.f32 %v231, %v229
    %v234 = vpack.c.bf16 %v233, %v232
    %v235 = vld [vmem:[#allocation7] sm:$0xf]
    %v236 = vld [vmem:[#allocation7 + $0x4] sm:$0xf]
    %v237 = vld [vmem:[#allocation7 + $0x8] sm:$0xf]
    %v238 = vld [vmem:[#allocation7 + $0xc] sm:$0xf]
    %v239 = vld [vmem:[#allocation7 + $0x10] sm:$0xf]
    %v240 = vld [vmem:[#allocation7 + $0x14] sm:$0xf]
    %v241 = vld [vmem:[#allocation7 + $0x18] sm:$0xf]
    %v242 = vld [vmem:[#allocation7 + $0x1c] sm:$0xf]
    %v243 = vld [vmem:[#allocation7 + $0x20] sm:$0xf]
    %v244 = vld [vmem:[#allocation7 + $0x24] sm:$0xf]
    %v245 = vld [vmem:[#allocation7 + $0x28] sm:$0xf]
    %v246 = vld [vmem:[#allocation7 + $0x2c] sm:$0xf]
    %v247 = vld [vmem:[#allocation7 + $0x30] sm:$0xf]
    %v248 = vld [vmem:[#allocation7 + $0x34] sm:$0xf]
    %v249 = vld [vmem:[#allocation7 + $0x38] sm:$0xf]
    %v250 = vld [vmem:[#allocation7 + $0x3c] sm:$0xf]
    %v251 = vld [vmem:[%s4] sm:$0x1]
    %v253 = vlaneseq
    %v254 = vshrl.u32 %v253, 7
    %v255 = vsub.s32 0, %v254
    %v256 = vrot.slane %v251, %v255
    %v274 = vunpack.c.l.b16 %v235
    %v275 = vunpack.c.l.b16 %v236
    %v276 = vunpack.c.l.b16 %v237
    %v277 = vunpack.c.l.b16 %v238
    %v278 = vunpack.c.l.b16 %v239
    %v279 = vunpack.c.l.b16 %v240
    %v280 = vunpack.c.l.b16 %v241
    %v281 = vunpack.c.l.b16 %v242
    %v282 = vunpack.c.l.b16 %v243
    %v283 = vunpack.c.l.b16 %v244
    %v284 = vunpack.c.l.b16 %v245
    %v285 = vunpack.c.l.b16 %v246
    %v286 = vunpack.c.l.b16 %v247
    %v287 = vunpack.c.l.b16 %v248
    %v288 = vunpack.c.l.b16 %v249
    %v289 = vunpack.c.l.b16 %v250
    %v290 = vpack.c.b16 %v275, %v274
    %v291 = vpack.c.b16 %v277, %v276
    %v292 = vpack.c.b16 %v279, %v278
    %v293 = vpack.c.b16 %v281, %v280
    %v294 = vpack.c.b16 %v283, %v282
    %v295 = vpack.c.b16 %v285, %v284
    %v296 = vpack.c.b16 %v287, %v286
    %v297 = vpack.c.b16 %v289, %v288
    %306 = vmatprep.subr.bf16.mxu0 0
    %307 = vmatpush1.bf16.msra.mxu0 %v290
    %308 = vmatprep.subr.bf16.mxu0 0
    %309 = vmatpush1.bf16.msra.mxu0 %v291
    %310 = vmatprep.subr.bf16.mxu0 0
    %311 = vmatpush1.bf16.msra.mxu0 %v292
    %312 = vmatprep.subr.bf16.mxu0 0
    %313 = vmatpush1.bf16.msra.mxu0 %v293
    %314 = vmatprep.subr.bf16.mxu0 0
    %315 = vmatpush1.bf16.msra.mxu0 %v294
    %316 = vmatprep.subr.bf16.mxu0 0
    %317 = vmatpush1.bf16.msra.mxu0 %v295
    %318 = vmatprep.subr.bf16.mxu0 0
    %319 = vmatpush1.bf16.msra.mxu0 %v296
    %320 = vmatprep.subr.bf16.mxu0 0
    %321 = vmatpush1.bf16.msra.mxu0 %v297
    %322 = vmatprep.subr.bf16.mxu0 0
    %323 = vmatpush1.bf16.msra.mxu0 0
    %324 = vmatprep.subr.bf16.mxu0 0
    %325 = vmatpush1.bf16.msra.mxu0 0
    %326 = vmatprep.subr.bf16.mxu0 0
    %327 = vmatpush1.bf16.msra.mxu0 0
    %328 = vmatprep.subr.bf16.mxu0 0
    %329 = vmatpush1.bf16.msra.mxu0 0
    %330 = vmatprep.subr.bf16.mxu0 0
    %331 = vmatpush1.bf16.msra.mxu0 0
    %332 = vmatprep.subr.bf16.mxu0 0
    %333 = vmatpush1.bf16.msra.mxu0 0
    %334 = vmatprep.subr.bf16.mxu0 0
    %335 = vmatpush1.bf16.msra.mxu0 0
    %336 = vmatprep.subr.bf16.mxu0 0
    %337 = vmatpush1.bf16.msra.mxu0 0
    %338 = vmatprep.mubr.bf16.mxu0 0
    %339 = vmatmul.mubr.bf16.gmra.mrb[0].mxu0 %v234
    %v340 = vpop.f32.mrb[0].mxu0
    %v341 = vadd.f32 %v256, %v340
    %v342 = vpop.f32.mrb[0].mxu0
    %v343 = vpop.f32.mrb[0].mxu0
    %v344 = vadd.f32 %v256, %v343
    %v345 = vpop.f32.mrb[0].mxu0
    %346 = vdwg.mxu0
    %347 = vmax.xlane.f32.xlu0 %v341
    %v348 = vpop.xlane.xlu0 %347
    %349 = vmax.xlane.f32.xlu0 %v344
    %v350 = vpop.xlane.xlu0 %349
    %v351 = vsub.f32 %v341, %v348
    %v352 = vsub.f32 %v344, %v350
    %v353 = vmul.f32 %v351, 1.442695
    %v354 = vpow.pop %v353
    %v355 = vmul.f32 %v352, 1.442695
    %v356 = vpow.pop %v355
    %357 = vadd.xlane.f32.xlu0 %v354
    %v358 = vpop.xlane.xlu0 %357
    %359 = vadd.xlane.f32.xlu0 %v356
    %v360 = vpop.xlane.xlu0 %359
    %v361 = vrcp.pop %v358
    %v362 = vrcp.pop %v360
    %v363 = vmul.f32 %v354, %v361
    %v364 = vmul.f32 %v356, %v362
    %v365 = vpack.c.bf16 %v364, %v363
    %v367 = vunpack.c.l.b16 %v365
    %v368 = vunpack.c.h.b16 %v365
    %v369 = vpack.c.b16 %v367, %v367
    %v370 = vpack.c.b16 %v368, %v368
    %373 = vst [vmem:[#allocation8] sm:$0xf] %v369
    %374 = vst [vmem:[#allocation8 + $0x4] sm:$0xf] %v370
    // Predicated region
    $region34: #{tpu_custom_call.1} parent=1 // pred_check
      _
    $region35: #{tpu_custom_call.1} parent=1 // pred_check_branch
      %376 = sbr.rel (0) target = $region37
    $region36: #{tpu_custom_call.1} parent=1 // pred_region
      %s378 = ssub.s32 128, 128
      %379 = vsyncadd [#allocation4], %s378
      %s380 = sshll.u32 [#allocation8], 4
      %s381 = int_to_ptr.vmem [resolvable:$true] %s380
      %386 = dma.vmem_to_hbm [thread:$0]  %s381, 128, %s5, [#allocation4], 64, 64, 4
    $region37: #{tpu_custom_call.1} parent=1 // pred_fallthru
      _
    // Predicated region
    $region38: #{tpu_custom_call.1} parent=1 // pred_check
      _
    $region39: #{tpu_custom_call.1} parent=1 // pred_check_branch
      %388 = sbr.rel (0) target = $region41
    $region40: #{tpu_custom_call.1} parent=1 // pred_region
      %389 = dma.done [#allocation4], 128
    $region41: #{tpu_custom_call.1} parent=1 // pred_fallthru
      _
    %390 = vsyncpa [#allocation3], 1
    %391 = vsyncpa [#allocation6], 1
    %392 = vsyncpa [#allocation4], 1

</llo_original>
